<compile_context>
chip_gen: v7x
topology: tpu7x:2x2x1
jax: 0.10.0
libtpu: 0.0.40
codegen_flags: <defaults>
</compile_context>

<pallas_src>
import functools

import numpy as np
import jax
import jax.numpy as jnp
from jax.experimental import pallas as pl
from jax.experimental.pallas import tpu as pltpu


def _mix_bits_u32(idx_u32, seed_u32):
    """Stateless per-element hash (splitmix32-style finalizer) -> uint32 bits."""
    x = idx_u32 ^ (seed_u32 * jnp.uint32(0x9E3779B9))
    x = (x ^ (x >> 16)) * jnp.uint32(0x7FEB352D)
    x = (x ^ (x >> 15)) * jnp.uint32(0x846CA68B)
    x = x ^ (x >> 16)
    return x


def _pos_enc_kernel(seed_ref, x_ref, pe_ref, out_ref, *,
                    keep_threshold_u32, inv_keep, training):
    # x_ref / out_ref: (TB, TR, C) tile; pe_ref: (TR, C) shared over the batch tile.
    y = x_ref[...] + pe_ref[...][None, :, :]
    if training:
        tb, tr, c = x_ref.shape
        b0 = pl.program_id(0) * tb
        r0 = pl.program_id(1) * tr
        r_total = pl.num_programs(1) * tr
        bi = jax.lax.broadcasted_iota(jnp.int32, (tb, tr, c), 0) + b0
        ri = jax.lax.broadcasted_iota(jnp.int32, (tb, tr, c), 1) + r0
        ci = jax.lax.broadcasted_iota(jnp.int32, (tb, tr, c), 2)
        idx = (bi * r_total + ri) * c + ci            # unique per element
        seed_u32 = seed_ref[0].astype(jnp.uint32)
        bits = _mix_bits_u32(idx.astype(jnp.uint32), seed_u32)
        # inverted dropout: keep w.p. (1-p), scale survivors by 1/(1-p).
        # strict '<' against round(keep_prob * 2^32) has a <=2^-32 bias (harmless).
        keep = bits < jnp.uint32(keep_threshold_u32)
        y = jnp.where(keep, y * inv_keep, jnp.zeros_like(y))
    out_ref[...] = y.astype(out_ref.dtype)


def _choose_tiles(batch, rows, cols, itemsize, target_bytes=2 << 20):
    """Pick (TB, TR) so each grid step moves ~target_bytes and obeys the
    (8, 128)/full-extent constraint on the second-to-last block dim."""
    row_bytes = cols * itemsize
    plane_bytes = max(rows * row_bytes, 1)
    if plane_bytes <= target_bytes:
        tr = rows                                   # full extent -> always legal
        tb = max(1, min(batch, target_bytes // plane_bytes))
    else:
        tb = 1
        tr = max(8, (target_bytes // max(row_bytes, 1)) // 8 * 8)
        tr = min(tr, rows)
        if tr != rows and tr % 8 != 0:              # only possible when rows < 8
            tr = rows
    return int(tb), int(tr)


def make_positional_encoding(embed, pad_size, dropout, dtype=jnp.float32):
    """Builds the deterministic PE table (same formula as the PyTorch module)
    and returns an apply(x, seed, training) function backed by a Pallas kernel."""
    pe_np = np.array(
        [[pos / 10000.0 ** (i // 2 * 2.0 / embed) for i in range(embed)]
         for pos in range(pad_size)],
        dtype=np.float64,
    )
    pe_np[:, 0::2] = np.sin(pe_np[:, 0::2])
    pe_np[:, 1::2] = np.cos(pe_np[:, 1::2])

    keep_prob = 1.0 - float(dropout)
    keep_threshold = (min(int(round(keep_prob * 2 ** 32)), 2 ** 32 - 1)
                      if keep_prob > 0.0 else 0)
    inv_keep = (1.0 / keep_prob) if keep_prob > 0.0 else 0.0

    def apply(x, seed=0, training=False):
        batch, S, E = x.shape
        assert (S, E) == (pad_size, embed), "input must be (B, pad_size, embed)"
        out_dtype = x.dtype
        pe_tbl = jnp.asarray(pe_np, dtype=out_dtype)   # match x dtype: no mixed-prec add
        itemsize = jnp.dtype(out_dtype).itemsize
        plane = S * E

        # Lane-dense fast path: flatten each (S, E) plane into rows of 128 lanes
        # (elementwise op, so any contiguous reshape is numerically identical).
        if plane % 128 == 0:
            rows, cols = plane // 128, 128
            x_k = x.reshape(batch, rows, cols)
            pe_k = pe_tbl.reshape(rows, cols)
        else:
            # TODO(synk): non-multiple-of-128 planes keep the (S, E) layout and
            # incur masked partial stores; could pad wrapper-side if it matters.
            rows, cols = S, E
            x_k = x
            pe_k = pe_tbl

        tb, tr = _choose_tiles(batch, rows, cols, itemsize)
        grid = (pl.cdiv(batch, tb), pl.cdiv(rows, tr))

        kernel = functools.partial(
            _pos_enc_kernel,
            keep_threshold_u32=keep_threshold,
            inv_keep=inv_keep,
            training=bool(training) and dropout > 0.0,
        )
        seed_arr = jnp.asarray([seed], dtype=jnp.int32)

        out = pl.pallas_call(
            kernel,
            out_shape=jax.ShapeDtypeStruct((batch, rows, cols), out_dtype),
            grid_spec=pltpu.PrefetchScalarGridSpec(
                num_scalar_prefetch=1,               # dropout seed lands in SMEM
                grid=grid,
                in_specs=[
                    pl.BlockSpec((tb, tr, cols), lambda b, r, s_ref: (b, r, 0)),
                    pl.BlockSpec((tr, cols), lambda b, r, s_ref: (r, 0)),
                ],
                out_specs=pl.BlockSpec((tb, tr, cols), lambda b, r, s_ref: (b, r, 0)),
            ),
            compiler_params=pltpu.CompilerParams(
                dimension_semantics=("parallel", "parallel"),
                vmem_limit_bytes=32 * 1024 * 1024,
            ),
        )(seed_arr, x_k, pe_k)
        return out.reshape(batch, S, E)

    return apply, jnp.asarray(pe_np, dtype=dtype)


if __name__ == "__main__":
    # Small shapes consistent with the module: batch=2, pad_size=8, embed=32.
    batch, pad_size, embed = 2, 8, 32
    dropout = 0.1

    key = jax.random.PRNGKey(0)
    x = jax.random.normal(key, (batch, pad_size, embed), dtype=jnp.float32)

    apply_pe, pe_table = make_positional_encoding(embed, pad_size, dropout)

    # Eval-mode (dropout is identity): deterministic, check against x + pe.
    out_eval = jax.block_until_ready(apply_pe(x, seed=0, training=False))
    ref = x + pe_table[None, :, :]
    assert jnp.allclose(out_eval, ref, atol=1e-6, rtol=1e-6), "eval-mode mismatch"

    # Train-mode: exercise the in-kernel dropout path (stateless hash PRNG).
    # TODO(synk): PyTorch's dropout RNG stream cannot be bit-reproduced; values
    # are checked to be either 0 or (x + pe) / (1 - p).
    out_train = jax.block_until_ready(apply_pe(x, seed=1234, training=True))
    assert out_train.shape == (batch, pad_size, embed)
    scaled = ref * (1.0 / (1.0 - dropout))
    ok = (jnp.isclose(out_train, 0.0, atol=1e-6)
          | jnp.isclose(out_train, scaled, rtol=1e-5, atol=1e-6))
    assert bool(ok.all()), "train-mode values are neither dropped nor scaled"

    print("KERNEL_OK")
</pallas_src>

<mosaic_0001>
module attributes {stable_mosaic.version = 11 : i64} {
  func.func @_pos_enc_kernel(%arg0: i32, %arg1: i32, %arg2: memref<1xi32, #tpu.memory_space<smem>>, %arg3: memref<2x2x128xf32, #tpu.memory_space<vmem>>, %arg4: memref<2x128xf32, #tpu.memory_space<vmem>>, %arg5: memref<2x2x128xf32, #tpu.memory_space<vmem>>) attributes {dimension_semantics = [#tpu.dimension_semantics<parallel>, #tpu.dimension_semantics<parallel>], iteration_bounds = array<i64: 1, 1>, scalar_prefetch = 1 : i64, scratch_operands = 0 : i64, tpu.core_type = #tpu.core_type<tc>, window_params = [{transform_indices = @transform_0, window_bounds = array<i64: 2, 2, 128>}, {transform_indices = @transform_1, window_bounds = array<i64: 2, 128>}, {transform_indices = @transform_2, window_bounds = array<i64: 2, 2, 128>}]} {
    %c0 = arith.constant 0 : index
    %c0_0 = arith.constant 0 : index
    %c0_1 = arith.constant 0 : index
    %0 = vector.load %arg3[%c0, %c0_0, %c0_1] : memref<2x2x128xf32, #tpu.memory_space<vmem>>, vector<2x2x128xf32>
    %c0_2 = arith.constant 0 : index
    %c0_3 = arith.constant 0 : index
    %1 = vector.load %arg4[%c0_2, %c0_3] : memref<2x128xf32, #tpu.memory_space<vmem>>, vector<2x128xf32>
    %2 = vector.shape_cast %1 : vector<2x128xf32> to vector<1x2x128xf32>
    %3 = vector.broadcast %2 : vector<1x2x128xf32> to vector<2x2x128xf32>
    %4 = arith.addf %0, %3 : vector<2x2x128xf32>
    %c0_4 = arith.constant 0 : index
    %c0_5 = arith.constant 0 : index
    %c0_6 = arith.constant 0 : index
    %5 = vector.load %arg5[%c0_4, %c0_5, %c0_6] : memref<2x2x128xf32, #tpu.memory_space<vmem>>, vector<2x2x128xf32>
    tpu.vector_store %arg5[%c0_4, %c0_5, %c0_6], %4 {strides = array<i32>} : memref<2x2x128xf32, #tpu.memory_space<vmem>>, vector<2x2x128xf32>,
    return
  }
  func.func @transform_0(%arg0: i32, %arg1: i32, %arg2: memref<1xi32, #tpu.memory_space<smem>>) -> (i32, i32, i32) {
    %c0_i32 = arith.constant 0 : i32
    %c0_i32_0 = arith.constant 0 : i32
    return %arg0, %arg1, %c0_i32 : i32, i32, i32
  }
  func.func @transform_1(%arg0: i32, %arg1: i32, %arg2: memref<1xi32, #tpu.memory_space<smem>>) -> (i32, i32) {
    %c0_i32 = arith.constant 0 : i32
    %c0_i32_0 = arith.constant 0 : i32
    return %arg1, %c0_i32 : i32, i32
  }
  func.func @transform_2(%arg0: i32, %arg1: i32, %arg2: memref<1xi32, #tpu.memory_space<smem>>) -> (i32, i32, i32) {
    %c0_i32 = arith.constant 0 : i32
    %c0_i32_0 = arith.constant 0 : i32
    return %arg0, %arg1, %c0_i32 : i32, i32, i32
  }
}

</mosaic_0001>

<llo_original>
// kernel: tpu_custom_call.1
$region0: #{tpu_custom_call.1}
  #allocation0 [shape = 'u32[]', space=smem, size = 0x4, offset = 0x4, fixed_abs, tag = 'smem constant byte address 0x4 - core index']
  #allocation1 [shape = 'u32[144,128]{1,0:T(1,128)}', space=vmem, size = 0x12000, scoped, tag = 'internal scratch']
  #allocation2 [shape = 's32[1]{0}', space=sflag, size = 0x4, scoped, tag = 'scoped memory for tpu_custom_call.1']
  #allocation3 [shape = 's32[1]{0:T(128)S(6)}', space=smem, size = 0x200, scoped, tag = 'prefetched SMEM operand 0']
  %s0 = inlined_call_operand.<no memory space> [shape: s32[1], index: 0, kind: input, shape index: {}]
  %s1 = inlined_call_operand.hbm [shape: f32[2,2,128], index: 1, kind: input, shape index: {}]
  %s2 = inlined_call_operand.vmem [shape: f32[2,128], index: 2, kind: input, shape index: {}]
  %s3 = inlined_call_operand.hbm [shape: f32[2,2,128], index: 3, kind: output, shape index: {}]
  %s4 = sld [smem:[#allocation0]]
  $region22: #{tpu_custom_call.1} parent=0
    _
  %s6 = ssub.s32 1, %s4
  %s7 = scalar_select 0, %s6, %s4
  %8 = sst [smem:[#allocation3]] %s0
  $region1: #{tpu_custom_call.1} parent=0
    #allocation4 [shape = 'u8[2048]{0}', space=vmem, size = 0x800, scoped, tag = 'input window, operand 1, single buffered']
    #allocation5 [shape = 's32[1]{0}', space=sflag, size = 0x4, scoped, tag = 'scoped memory for tpu_custom_call.1']
    #allocation6 [shape = 's32[1]{0}', space=sflag, size = 0x4, scoped, tag = 'scoped memory for tpu_custom_call.1']
    #allocation7 [shape = 'u8[2048]{0}', space=vmem, size = 0x800, scoped, tag = 'output window, operand 0, single buffered']
    %9 = vsyncpa [#allocation5], 0
    %10 = vsyncpa [#allocation6], 0
    // Predicated region
    $region2: #{tpu_custom_call.1} parent=1 // pred_check
      _
    $region3: #{tpu_custom_call.1} parent=1 // pred_check_branch
      %12 = sbr.rel (0) target = $region5
    $region4: #{tpu_custom_call.1} parent=1 // pred_region
      %s14 = ssub.s32 64, 64
      %15 = vsyncadd [#allocation5], %s14
      %s16 = sshll.u32 [#allocation4], 4
      %s17 = int_to_ptr.vmem [resolvable:$true] %s16
      %22 = dma.hbm_to_vmem [thread:$0]  %s1, 64, %s17, [#allocation5], 32, 32, 2
    $region5: #{tpu_custom_call.1} parent=1 // pred_fallthru
      _
    // Predicated region
    $region6: #{tpu_custom_call.1} parent=1 // pred_check
      _
    $region7: #{tpu_custom_call.1} parent=1 // pred_check_branch
      %24 = sbr.rel (0) target = $region9
    $region8: #{tpu_custom_call.1} parent=1 // pred_region
      _
    $region9: #{tpu_custom_call.1} parent=1 // pred_fallthru
      _
    // Predicated region
    $region10: #{tpu_custom_call.1} parent=1 // pred_check
      _
    $region11: #{tpu_custom_call.1} parent=1 // pred_check_branch
      %26 = sbr.rel (0) target = $region13
    $region12: #{tpu_custom_call.1} parent=1 // pred_region
      %27 = dma.done [#allocation5], 64
    $region13: #{tpu_custom_call.1} parent=1 // pred_fallthru
      _
    %v28 = vld [vmem:[#allocation4] sm:$0x3]
    %v29 = vld [vmem:[#allocation4 + $0x2] sm:$0x3]
    %v30 = vld [vmem:[%s2] sm:$0x3]
    %v31 = vadd.f32 %v28, %v30
    %v32 = vadd.f32 %v29, %v30
    %33 = vst [vmem:[#allocation7] sm:$0x3] %v31
    %34 = vst [vmem:[#allocation7 + $0x2] sm:$0x3] %v32
    // Predicated region
    $region14: #{tpu_custom_call.1} parent=1 // pred_check
      _
    $region15: #{tpu_custom_call.1} parent=1 // pred_check_branch
      %36 = sbr.rel (0) target = $region17
    $region16: #{tpu_custom_call.1} parent=1 // pred_region
      %s38 = ssub.s32 64, 64
      %39 = vsyncadd [#allocation6], %s38
      %s40 = sshll.u32 [#allocation7], 4
      %s41 = int_to_ptr.vmem [resolvable:$true] %s40
      %46 = dma.vmem_to_hbm [thread:$0]  %s41, 64, %s3, [#allocation6], 32, 32, 2
    $region17: #{tpu_custom_call.1} parent=1 // pred_fallthru
      _
    // Predicated region
    $region18: #{tpu_custom_call.1} parent=1 // pred_check
      _
    $region19: #{tpu_custom_call.1} parent=1 // pred_check_branch
      %48 = sbr.rel (0) target = $region21
    $region20: #{tpu_custom_call.1} parent=1 // pred_region
      %49 = dma.done [#allocation6], 64
    $region21: #{tpu_custom_call.1} parent=1 // pred_fallthru
      _
    %50 = vsyncpa [#allocation5], 1
    %51 = vsyncpa [#allocation6], 1

</llo_original>
